<compile_context>
chip_gen: v7x
topology: tpu7x:2x2x1
jax: 0.10.0
libtpu: 0.0.40
codegen_flags: <defaults>
</compile_context>

<pallas_src>
import jax
import jax.numpy as jnp
from jax.experimental import pallas as pl
from jax.experimental.pallas import tpu as pltpu


def _round_up(x, m):
    return (x + m - 1) // m * m


def _pick_tile(S, D, itemsize, has_tt):
    """Largest token tile (multiple of 8) whose VMEM footprint fits the budget."""
    budget = 12 * 1024 * 1024  # leaves headroom under 32 MiB scoped VMEM (v7x-safe)
    # buffers: 2-slot wte gather (+2-slot token-type gather), double-buffered
    # wpe input block, double-buffered output block.
    n_bufs = (4 if has_tt else 2) + 2 + 2
    cap = max(8, _round_up(S, 8))
    for tile in (512, 256, 128, 64, 32, 16, 8):
        if tile <= cap and n_bufs * tile * D * itemsize <= budget:
            return tile
    return 8


# ----------------------------------------------------------------------------
# Fused kernel: manual batched row-gather of wte (+ optional token-type rows)
# with cross-step double buffering, plus contiguous wpe tile add.
# ----------------------------------------------------------------------------
def _make_embed_kernel(tile, s_pad, has_tt):
    def kernel(*args):
        if has_tt:
            (ids_sm, tt_sm, wte_hbm, wpe_ref, out_ref,
             gbuf, tbuf, gsem, tsem) = args
        else:
            (ids_sm, wte_hbm, wpe_ref, out_ref, gbuf, gsem) = args
            tt_sm = tbuf = tsem = None

        b = pl.program_id(0)
        j = pl.program_id(1)
        n_j = pl.num_programs(1)
        slot = j % 2

        def issue_gather(jj, s):
            # Launch `tile` row DMAs (all in flight at once) into slot `s`.
            base = b * s_pad + jj * tile

            @pl.loop(0, tile)
            def _(t):
                row = ids_sm[base + t]
                pltpu.make_async_copy(
                    wte_hbm.at[row], gbuf.at[s, t], gsem.at[s]).start()
                if has_tt:
                    trow = tt_sm[base + t]
                    pltpu.make_async_copy(
                        wte_hbm.at[trow], tbuf.at[s, t], tsem.at[s]).start()

        def wait_gather(s):
            @pl.loop(0, tile)
            def _(t):
                pltpu.make_async_copy(
                    wte_hbm.at[0], gbuf.at[s, t], gsem.at[s]).wait()
                if has_tt:
                    pltpu.make_async_copy(
                        wte_hbm.at[0], tbuf.at[s, t], tsem.at[s]).wait()

        # Prime the pipeline at the first tile of each batch row.
        @pl.when(j == 0)
        def _():
            issue_gather(0, 0)

        # Prefetch the next tile's rows before waiting on this tile, so the
        # gather of tile j+1 overlaps the add/store of tile j.
        @pl.when(j + 1 < n_j)
        def _():
            issue_gather(j + 1, 1 - slot)

        wait_gather(slot)

        # Add in the native embedding dtype (bf16 add stays bf16 on v6e/v7x).
        acc = gbuf[slot] + wpe_ref[...]
        if has_tt:
            acc = acc + tbuf[slot]
        out_ref[...] = acc.astype(out_ref.dtype)

    return kernel


def embed_lookup_add(input_ids, wte, wpe, *, position_ids=None,
                     token_type_ids=None, past_length=0, out_dtype=None):
    """Fused wte[input_ids] + wpe[positions] (+ wte[token_type_ids])."""
    B, S = input_ids.shape
    V, D = wte.shape
    P = wpe.shape[0]
    if out_dtype is None:
        out_dtype = wte.dtype
    has_tt = token_type_ids is not None

    itemsize = jnp.dtype(wte.dtype).itemsize
    tile = _pick_tile(S, D, itemsize, has_tt)
    s_pad = _round_up(S, tile)
    n_j = s_pad // tile

    # Token ids: clamp into range, pad the sequence axis, flatten for SMEM.
    ids = jnp.clip(input_ids.astype(jnp.int32), 0, V - 1)
    ids = jnp.pad(ids, ((0, 0), (0, s_pad - S))).reshape(-1)
    scalar_args = [ids]
    if has_tt:
        tt = jnp.broadcast_to(token_type_ids.astype(jnp.int32).reshape(-1, S),
                              (B, S))
        tt = jnp.clip(tt, 0, V - 1)
        tt = jnp.pad(tt, ((0, 0), (0, s_pad - S))).reshape(-1)
        scalar_args.append(tt)

    # Position embeddings: contiguous slice when positions are the default
    # arange (no per-row DMA at all); otherwise a single XLA gather feeds the
    # same blocked (TILE, D) path.
    if position_ids is None and int(past_length) + S <= P and S <= P:
        start = max(0, min(int(past_length), P - S))
        wpe_rows = jax.lax.dynamic_slice(wpe, (start, 0), (S, D))
        wpe_rows = jnp.pad(wpe_rows, ((0, s_pad - S), (0, 0)))
        wpe_spec = pl.BlockSpec((tile, D), lambda b, j, *pf: (j, 0))
    else:
        if position_ids is None:
            pos = jnp.arange(past_length, past_length + S, dtype=jnp.int32)
            pos = jnp.broadcast_to(pos[None, :], (B, S))
        else:
            pos = jnp.broadcast_to(position_ids.astype(jnp.int32).reshape(-1, S),
                                   (B, S))
        pos = jnp.clip(pos, 0, P - 1)
        pos = jnp.pad(pos, ((0, 0), (0, s_pad - S)))
        wpe_rows = jnp.take(wpe, pos, axis=0)                 # [B, s_pad, D]
        wpe_spec = pl.BlockSpec((None, tile, D), lambda b, j, *pf: (b, j, 0))

    scratch = [pltpu.VMEM((2, tile, D), wte.dtype)]
    if has_tt:
        scratch.append(pltpu.VMEM((2, tile, D), wte.dtype))
    scratch.append(pltpu.SemaphoreType.DMA((2,)))
    if has_tt:
        scratch.append(pltpu.SemaphoreType.DMA((2,)))

    grid_spec = pltpu.PrefetchScalarGridSpec(
        num_scalar_prefetch=len(scalar_args),
        grid=(B, n_j),
        in_specs=[
            pl.BlockSpec(memory_space=pl.ANY),   # wte stays in HBM (manual gather)
            wpe_spec,                            # contiguous / pre-gathered wpe rows
        ],
        out_specs=pl.BlockSpec((None, tile, D), lambda b, j, *pf: (b, j, 0)),
        scratch_shapes=scratch,
    )

    out = pl.pallas_call(
        _make_embed_kernel(tile, s_pad, has_tt),
        grid_spec=grid_spec,
        out_shape=jax.ShapeDtypeStruct((B, s_pad, D), out_dtype),
        compiler_params=pltpu.CompilerParams(
            dimension_semantics=("parallel", "arbitrary"),
            vmem_limit_bytes=32 * 1024 * 1024,
        ),
    )(*scalar_args, wte, wpe_rows)

    return out[:, :S, :]


# ----------------------------------------------------------------------------
# EmbeddingPipe forward (inference semantics).
# ----------------------------------------------------------------------------
def embedding_pipe_forward(input_ids, wte, wpe, *, attention_mask=None,
                           token_type_ids=None, position_ids=None,
                           head_mask=None, inputs_embeds=None,
                           past_length=0, dtype=jnp.float32):
    if input_ids is not None and inputs_embeds is not None:
        raise ValueError(
            "You cannot specify both input_ids and inputs_embeds at the same time")
    if input_ids is not None:
        input_ids = input_ids.reshape(-1, input_ids.shape[-1])
        B, S = input_ids.shape
    elif inputs_embeds is not None:
        B, S = inputs_embeds.shape[0], inputs_embeds.shape[-2]
    else:
        raise ValueError("You have to specify either input_ids or inputs_embeds")

    if inputs_embeds is None:
        # Hidden states keep the embedding dtype (bf16 tables -> bf16 output,
        # halving HBM writeback bytes); `dtype` only affects the mask, as in torch.
        hidden_states = embed_lookup_add(
            input_ids, wte, wpe,
            position_ids=position_ids,
            token_type_ids=token_type_ids,
            past_length=past_length,
            out_dtype=wte.dtype)
    else:
        # Rare path: dense embeddings supplied by the caller -- plain JAX add.
        if position_ids is None:
            pos = jnp.arange(past_length, past_length + S, dtype=jnp.int32)
            pos = jnp.broadcast_to(pos[None, :], (B, S))
        else:
            pos = jnp.broadcast_to(position_ids.astype(jnp.int32).reshape(-1, S),
                                   (B, S))
        pos = jnp.clip(pos, 0, wpe.shape[0] - 1)
        hidden_states = inputs_embeds + jnp.take(wpe, pos, axis=0)
        if token_type_ids is not None:
            tt = jnp.clip(token_type_ids.astype(jnp.int32).reshape(-1, S),
                          0, wte.shape[0] - 1)
            hidden_states = hidden_states + jnp.take(wte, tt, axis=0)

    # Dropout is identity at inference time.
    # TODO(synk): training-mode dropout (embd_pdrop) not implemented.

    mask_out = None
    if attention_mask is not None:
        # Trivial elementwise op: leave it to XLA (no extra kernel launch).
        m = attention_mask.reshape(B, -1).astype(dtype)
        mask_out = ((1.0 - m) * jnp.asarray(-10000.0, dtype))[:, None, None, :]

    return hidden_states, head_mask, mask_out


# ----------------------------------------------------------------------------
# Demo / self-test
# ----------------------------------------------------------------------------
if __name__ == "__main__":
    VOCAB, MAX_POS, HIDDEN = 64, 32, 128
    key = jax.random.PRNGKey(0)
    k_wte, k_wpe, k_ids, k_mask, k_ids2, k_pos, k_tt = jax.random.split(key, 7)

    wte = jax.random.normal(k_wte, (VOCAB, HIDDEN), dtype=jnp.float32)
    wpe = jax.random.normal(k_wpe, (MAX_POS, HIDDEN), dtype=jnp.float32)

    # --- Case 1: default positions, no token types (B=2, S=8) --------------
    B, S = 2, 8
    input_ids = jax.random.randint(k_ids, (B, S), 0, VOCAB, dtype=jnp.int32)
    attention_mask = (jax.random.uniform(k_mask, (B, S)) > 0.2).astype(jnp.float32)

    hidden, head_mask, mask_out = embedding_pipe_forward(
        input_ids, wte, wpe, attention_mask=attention_mask, dtype=jnp.float32)
    jax.block_until_ready(hidden)
    jax.block_until_ready(mask_out)

    ref_hidden = wte[input_ids] + wpe[jnp.arange(S)][None, :, :]
    ref_mask = ((1.0 - attention_mask) * -10000.0)[:, None, None, :]
    assert hidden.shape == (B, S, HIDDEN)
    assert mask_out.shape == (B, 1, 1, S)
    assert jnp.allclose(hidden, ref_hidden, atol=1e-5)
    assert jnp.allclose(mask_out, ref_mask, atol=1e-5)
    assert head_mask is None

    # --- Case 2: default positions with past_length (KV-cache decode) ------
    past = 4
    hidden2, _, _ = embedding_pipe_forward(
        input_ids, wte, wpe, past_length=past, dtype=jnp.float32)
    jax.block_until_ready(hidden2)
    ref2 = wte[input_ids] + wpe[jnp.arange(past, past + S)][None, :, :]
    assert jnp.allclose(hidden2, ref2, atol=1e-5)

    # --- Case 3: explicit position_ids + fused token_type_ids, S=20
    #             (two tiles per batch row, sequence padding, prefetch path) -
    B3, S3 = 2, 20
    ids3 = jax.random.randint(k_ids2, (B3, S3), 0, VOCAB, dtype=jnp.int32)
    pos3 = jax.random.randint(k_pos, (B3, S3), 0, MAX_POS, dtype=jnp.int32)
    tt3 = jax.random.randint(k_tt, (B3, S3), 0, VOCAB, dtype=jnp.int32)
    hidden3, _, _ = embedding_pipe_forward(
        ids3, wte, wpe, position_ids=pos3, token_type_ids=tt3, dtype=jnp.float32)
    jax.block_until_ready(hidden3)
    ref3 = wte[ids3] + wpe[pos3] + wte[tt3]
    assert hidden3.shape == (B3, S3, HIDDEN)
    assert jnp.allclose(hidden3, ref3, atol=1e-5)

    # --- Case 4: default positions, multi-tile sequence (contiguous wpe) ---
    hidden4, _, _ = embedding_pipe_forward(ids3, wte, wpe, dtype=jnp.float32)
    jax.block_until_ready(hidden4)
    ref4 = wte[ids3] + wpe[jnp.arange(S3)][None, :, :]
    assert jnp.allclose(hidden4, ref4, atol=1e-5)

    print("KERNEL_OK")
</pallas_src>

<mosaic_0001>
module attributes {stable_mosaic.version = 11 : i64} {
  func.func @kernel(%arg0: i32, %arg1: i32, %arg2: memref<16xi32, #tpu.memory_space<smem>>, %arg3: memref<64x128xf32, #tpu.memory_space<any>>, %arg4: memref<8x128xf32, #tpu.memory_space<vmem>>, %arg5: memref<1x8x128xf32, #tpu.memory_space<vmem>>, %arg6: memref<2x8x128xf32, #tpu.memory_space<vmem>>, %arg7: memref<2x!tpu.dma_semaphore, #tpu.memory_space<semaphore_mem>>) attributes {dimension_semantics = [#tpu.dimension_semantics<parallel>, #tpu.dimension_semantics<arbitrary>], iteration_bounds = array<i64: 2, 1>, scalar_prefetch = 1 : i64, scratch_operands = 2 : i64, tpu.core_type = #tpu.core_type<tc>, window_params = [{}, {transform_indices = @transform_1, window_bounds = array<i64: 8, 128>}, {transform_indices = @transform_2, window_bounds = array<i64: 1, 8, 128>}]} {
    %c2_i32 = arith.constant 2 : i32
    %c0_i32 = arith.constant 0 : i32
    %0 = arith.cmpi eq, %c2_i32, %c0_i32 : i32
    %c1_i32 = arith.constant 1 : i32
    %1 = arith.select %0, %c1_i32, %c2_i32 : i32
    %2 = arith.remsi %arg1, %1 : i32
    %c0_i32_0 = arith.constant 0 : i32
    %3 = arith.cmpi ne, %2, %c0_i32_0 : i32
    %c0_i32_1 = arith.constant 0 : i32
    %4 = arith.cmpi slt, %2, %c0_i32_1 : i32
    %c0_i32_2 = arith.constant 0 : i32
    %5 = arith.cmpi slt, %1, %c0_i32_2 : i32
    %6 = arith.xori %4, %5 : i1
    %7 = arith.andi %6, %3 : i1
    %8 = arith.addi %2, %1 : i32
    %9 = arith.select %7, %8, %2 : i32
    %c0_i32_3 = arith.constant 0 : i32
    %10 = arith.cmpi eq, %arg1, %c0_i32_3 : i32
    %11 = arith.extui %10 : i1 to i32
    %c0_i32_4 = arith.constant 0 : i32
    %12 = arith.cmpi ne, %11, %c0_i32_4 : i32
    scf.if %12 {
      %c8_i32_17 = arith.constant 8 : i32
      %26 = arith.muli %arg0, %c8_i32_17 : i32
      %c0_i32_18 = arith.constant 0 : i32
      %27 = arith.addi %26, %c0_i32_18 : i32
      %c0_i32_19 = arith.constant 0 : i32
      %c8_i32_20 = arith.constant 8 : i32
      %28 = arith.addi %c0_i32_19, %c8_i32_20 : i32
      %c1_i32_21 = arith.constant 1 : i32
      scf.for %arg8 = %c0_i32_19 to %28 step %c1_i32_21  : i32 {
        %c1_i32_23 = arith.constant 1 : i32
        %29 = arith.muli %arg8, %c1_i32_23 : i32
        %c0_i32_24 = arith.constant 0 : i32
        %30 = arith.addi %c0_i32_24, %29 : i32
        %31 = arith.addi %27, %30 : i32
        %32 = arith.index_cast %31 : i32 to index
        %33 = memref.load %arg2[%32] : memref<16xi32, #tpu.memory_space<smem>>
        %c0_i32_25 = arith.constant 0 : i32
        %c0_i32_26 = arith.constant 0 : i32
        %c0_i32_27 = arith.constant 0 : i32
        %34 = tpu.memref_slice %arg3[%33, %c0_i32_27] : memref<64x128xf32, #tpu.memory_space<any>> -> memref<1x128xf32, #tpu.memory_space<any>>
        %35 = tpu.memref_squeeze %34 : memref<1x128xf32, #tpu.memory_space<any>> -> memref<128xf32, #tpu.memory_space<any>>
        %c0_i32_28 = arith.constant 0 : i32
        %36 = tpu.memref_slice %arg6[%c0_i32_25, %30, %c0_i32_28] : memref<2x8x128xf32, #tpu.memory_space<vmem>> -> memref<1x1x128xf32, #tpu.memory_space<vmem>>
        %37 = tpu.memref_squeeze %36 : memref<1x1x128xf32, #tpu.memory_space<vmem>> -> memref<128xf32, #tpu.memory_space<vmem>>
        %38 = tpu.memref_slice %arg7[%c0_i32_26] : memref<2x!tpu.dma_semaphore, #tpu.memory_space<semaphore_mem>> -> memref<1x!tpu.dma_semaphore, #tpu.memory_space<semaphore_mem>>
        %39 = tpu.memref_squeeze %38 : memref<1x!tpu.dma_semaphore, #tpu.memory_space<semaphore_mem>> -> memref<!tpu.dma_semaphore, #tpu.memory_space<semaphore_mem>>
        tpu.enqueue_dma source(%35 : memref<128xf32, #tpu.memory_space<any>>) target(%37 : memref<128xf32, #tpu.memory_space<vmem>>) target_semaphore(%39 : memref<!tpu.dma_semaphore, #tpu.memory_space<semaphore_mem>>)
      }
      %c8_i32_22 = arith.constant 8 : i32
    } else {
    }
    %c1_i32_5 = arith.constant 1 : i32
    %13 = arith.addi %arg1, %c1_i32_5 : i32
    %c1_i32_6 = arith.constant 1 : i32
    %14 = arith.cmpi slt, %13, %c1_i32_6 : i32
    %15 = arith.extui %14 : i1 to i32
    %c0_i32_7 = arith.constant 0 : i32
    %16 = arith.cmpi ne, %15, %c0_i32_7 : i32
    scf.if %16 {
      %c1_i32_17 = arith.constant 1 : i32
      %26 = arith.addi %arg1, %c1_i32_17 : i32
      %c1_i32_18 = arith.constant 1 : i32
      %27 = arith.subi %c1_i32_18, %9 : i32
      %c8_i32_19 = arith.constant 8 : i32
      %28 = arith.muli %arg0, %c8_i32_19 : i32
      %c8_i32_20 = arith.constant 8 : i32
      %29 = arith.muli %26, %c8_i32_20 : i32
      %30 = arith.addi %28, %29 : i32
      %c0_i32_21 = arith.constant 0 : i32
      %c8_i32_22 = arith.constant 8 : i32
      %31 = arith.addi %c0_i32_21, %c8_i32_22 : i32
      %c1_i32_23 = arith.constant 1 : i32
      scf.for %arg8 = %c0_i32_21 to %31 step %c1_i32_23  : i32 {
        %c1_i32_25 = arith.constant 1 : i32
        %32 = arith.muli %arg8, %c1_i32_25 : i32
        %c0_i32_26 = arith.constant 0 : i32
        %33 = arith.addi %c0_i32_26, %32 : i32
        %34 = arith.addi %30, %33 : i32
        %35 = arith.index_cast %34 : i32 to index
        %36 = memref.load %arg2[%35] : memref<16xi32, #tpu.memory_space<smem>>
        %c0_i32_27 = arith.constant 0 : i32
        %37 = tpu.memref_slice %arg3[%36, %c0_i32_27] : memref<64x128xf32, #tpu.memory_space<any>> -> memref<1x128xf32, #tpu.memory_space<any>>
        %38 = tpu.memref_squeeze %37 : memref<1x128xf32, #tpu.memory_space<any>> -> memref<128xf32, #tpu.memory_space<any>>
        %c0_i32_28 = arith.constant 0 : i32
        %39 = tpu.memref_slice %arg6[%27, %33, %c0_i32_28] : memref<2x8x128xf32, #tpu.memory_space<vmem>> -> memref<1x1x128xf32, #tpu.memory_space<vmem>>
        %40 = tpu.memref_squeeze %39 : memref<1x1x128xf32, #tpu.memory_space<vmem>> -> memref<128xf32, #tpu.memory_space<vmem>>
        %41 = tpu.memref_slice %arg7[%27] : memref<2x!tpu.dma_semaphore, #tpu.memory_space<semaphore_mem>> -> memref<1x!tpu.dma_semaphore, #tpu.memory_space<semaphore_mem>>
        %42 = tpu.memref_squeeze %41 : memref<1x!tpu.dma_semaphore, #tpu.memory_space<semaphore_mem>> -> memref<!tpu.dma_semaphore, #tpu.memory_space<semaphore_mem>>
        tpu.enqueue_dma source(%38 : memref<128xf32, #tpu.memory_space<any>>) target(%40 : memref<128xf32, #tpu.memory_space<vmem>>) target_semaphore(%42 : memref<!tpu.dma_semaphore, #tpu.memory_space<semaphore_mem>>)
      }
      %c8_i32_24 = arith.constant 8 : i32
    } else {
    }
    %c0_i32_8 = arith.constant 0 : i32
    %c8_i32 = arith.constant 8 : i32
    %17 = arith.addi %c0_i32_8, %c8_i32 : i32
    %c1_i32_9 = arith.constant 1 : i32
    scf.for %arg8 = %c0_i32_8 to %17 step %c1_i32_9  : i32 {
      %c1_i32_17 = arith.constant 1 : i32
      %26 = arith.muli %arg8, %c1_i32_17 : i32
      %c0_i32_18 = arith.constant 0 : i32
      %27 = arith.addi %c0_i32_18, %26 : i32
      %c0_i32_19 = arith.constant 0 : i32
      %c0_i32_20 = arith.constant 0 : i32
      %28 = tpu.memref_slice %arg3[%c0_i32_19, %c0_i32_20] : memref<64x128xf32, #tpu.memory_space<any>> -> memref<1x128xf32, #tpu.memory_space<any>>
      %29 = tpu.memref_squeeze %28 : memref<1x128xf32, #tpu.memory_space<any>> -> memref<128xf32, #tpu.memory_space<any>>
      %c0_i32_21 = arith.constant 0 : i32
      %30 = tpu.memref_slice %arg6[%9, %27, %c0_i32_21] : memref<2x8x128xf32, #tpu.memory_space<vmem>> -> memref<1x1x128xf32, #tpu.memory_space<vmem>>
      %31 = tpu.memref_squeeze %30 : memref<1x1x128xf32, #tpu.memory_space<vmem>> -> memref<128xf32, #tpu.memory_space<vmem>>
      %32 = tpu.memref_slice %arg7[%9] : memref<2x!tpu.dma_semaphore, #tpu.memory_space<semaphore_mem>> -> memref<1x!tpu.dma_semaphore, #tpu.memory_space<semaphore_mem>>
      %33 = tpu.memref_squeeze %32 : memref<1x!tpu.dma_semaphore, #tpu.memory_space<semaphore_mem>> -> memref<!tpu.dma_semaphore, #tpu.memory_space<semaphore_mem>>
      tpu.wait_dma2 semaphore(%33 : memref<!tpu.dma_semaphore, #tpu.memory_space<semaphore_mem>>) src(%29 : memref<128xf32, #tpu.memory_space<any>>) dst(%31 : memref<128xf32, #tpu.memory_space<vmem>>)
    }
    %c8_i32_10 = arith.constant 8 : i32
    %18 = arith.index_cast %9 : i32 to index
    %c0 = arith.constant 0 : index
    %c0_11 = arith.constant 0 : index
    %19 = vector.load %arg6[%18, %c0, %c0_11] : memref<2x8x128xf32, #tpu.memory_space<vmem>>, vector<1x8x128xf32>
    %20 = vector.shape_cast %19 : vector<1x8x128xf32> to vector<8x128xf32>
    %c0_12 = arith.constant 0 : index
    %c0_13 = arith.constant 0 : index
    %21 = vector.load %arg4[%c0_12, %c0_13] : memref<8x128xf32, #tpu.memory_space<vmem>>, vector<8x128xf32>
    %22 = arith.addf %20, %21 : vector<8x128xf32>
    %c0_14 = arith.constant 0 : index
    %c0_15 = arith.constant 0 : index
    %c0_16 = arith.constant 0 : index
    %23 = vector.load %arg5[%c0_14, %c0_15, %c0_16] : memref<1x8x128xf32, #tpu.memory_space<vmem>>, vector<1x8x128xf32>
    %24 = vector.shape_cast %23 : vector<1x8x128xf32> to vector<8x128xf32>
    %25 = vector.shape_cast %22 : vector<8x128xf32> to vector<1x8x128xf32>
    tpu.vector_store %arg5[%c0_14, %c0_15, %c0_16], %25 {strides = array<i32>} : memref<1x8x128xf32, #tpu.memory_space<vmem>>, vector<1x8x128xf32>,
    return
  }
  func.func @transform_1(%arg0: i32, %arg1: i32, %arg2: memref<16xi32, #tpu.memory_space<smem>>) -> (i32, i32) {
    %c0_i32 = arith.constant 0 : i32
    %c0_i32_0 = arith.constant 0 : i32
    return %arg1, %c0_i32 : i32, i32
  }
  func.func @transform_2(%arg0: i32, %arg1: i32, %arg2: memref<16xi32, #tpu.memory_space<smem>>) -> (i32, i32, i32) {
    %c0_i32 = arith.constant 0 : i32
    %c0_i32_0 = arith.constant 0 : i32
    return %arg0, %arg1, %c0_i32 : i32, i32, i32
  }
}

</mosaic_0001>

<llo_original>
// kernel: tpu_custom_call.1
$region0: #{tpu_custom_call.1}
  #allocation0 [shape = 'u32[]', space=smem, size = 0x4, offset = 0x4, fixed_abs, tag = 'smem constant byte address 0x4 - core index']
  #allocation1 [shape = 'u32[144,128]{1,0:T(1,128)}', space=vmem, size = 0x12000, scoped, tag = 'internal scratch']
  #allocation2 [shape = 'f32[2,8,128]{2,1,0:T(8,128)}', space=vmem, size = 0x2000, scoped, tag = 'scratch operand']
  #allocation3 [shape = 's32[2]{0}', space=sflag, size = 0x8, scoped, tag = 'scratch operand']
  #allocation4 [shape = 's32[1]{0}', space=sflag, size = 0x4, scoped, tag = 'scoped memory for tpu_custom_call.1']
  #allocation5 [shape = 'u8[512]{0}', space=smem, size = 0x200, scoped, tag = 'prefetched SMEM operand 0']
  #allocation10 [shape = 's32[]', space=sflag, size = 0x4, offset = 0, fixed_abs, tag = 'sflag constant byte address 0x0 - dummy sync flag']
  #allocation11 [shape = 's32[]', space=sflag, size = 0x4, offset = 0, fixed_abs, tag = 'sflag constant byte address 0x0 - dummy sync flag']
  #allocation12 [shape = 'u32[]', space=smem, size = 0x4, offset = 0x44, fixed_abs, tag = 'smem constant byte address 0x44 - assertion arg 0']
  #allocation13 [shape = 'u32[]', space=smem, size = 0x4, offset = 0x48, fixed_abs, tag = 'smem constant byte address 0x48 - assertion arg 1']
  #allocation14 [shape = 's32[]', space=sflag, size = 0x4, offset = 0, fixed_abs, tag = 'sflag constant byte address 0x0 - dummy sync flag']
  #allocation15 [shape = 's32[]', space=sflag, size = 0x4, offset = 0, fixed_abs, tag = 'sflag constant byte address 0x0 - dummy sync flag']
  %s0 = inlined_call_operand.hbm [shape: s32[16], index: 0, kind: input, shape index: {}]
  %s1 = inlined_call_operand.hbm [shape: f32[64,128], index: 1, kind: input, shape index: {}]
  %s2 = inlined_call_operand.hbm [shape: f32[8,128], index: 2, kind: input, shape index: {}]
  %s3 = inlined_call_operand.hbm [shape: f32[2,8,128], index: 3, kind: output, shape index: {}]
  %s4 = sld [smem:[#allocation0]]
  $region78: #{tpu_custom_call.1} parent=0
    _
  %s6 = ssub.s32 1, %s4
  %s7 = scalar_select 0, %s6, %s4
  %9 = dma.hbm_to_smem %s0, 16, [#allocation5], [#allocation4]
  %10 = dma.done [#allocation4], 16
  %11 = sfence
  $region1: #{tpu_custom_call.1} parent=0
    #allocation6 [shape = 'u8[4096]{0}', space=vmem, size = 0x1000, scoped, tag = 'input window, operand 2, single buffered']
    #allocation7 [shape = 's32[2]{0}', space=sflag, size = 0x8, scoped, tag = 'scoped memory for tpu_custom_call.1']
    #allocation8 [shape = 's32[2]{0}', space=sflag, size = 0x8, scoped, tag = 'scoped memory for tpu_custom_call.1']
    #allocation9 [shape = 'u8[8192]{0}', space=vmem, size = 0x2000, scoped, tag = 'output window, operand 0']
    %12 = vsyncpa [#allocation7], 0
    %13 = vsyncpa [#allocation8], 0
    %s14 = scalar_lea.sflag [#allocation8], 1
    %15 = vsyncpa %s14, 0
    loop: start=0, step=1, limit=4
    $region2: #{tpu_custom_call.1} parent=1 // loop_pre_header
      _
    $region3: #{tpu_custom_call.1} parent=1 // loop_header
      %s17 = sphi 0, %s21
      %p18 = scmp.ge.s32.totalorder %s17, 4
      %s24 = sphi 0, %s36
      %s25 = sphi 0, %s32
      %s26 = sphi 0, %s24
      %s27 = sphi 0, %s25
      %s28 = sphi 0, %s26
      %s29 = sphi 0, %s27
      %s39 = sphi 0, %s41
      %s42 = sphi 0, %s39
      %s43 = sphi 0, %s42
      %s59 = sphi 0, %s43
      %s67 = sphi 0, %s69
      %s70 = sphi 0, %s67
      %s71 = sphi 0, %s70
      %s87 = sphi 0, %s71
    $region4: #{tpu_custom_call.1} parent=1 // loop_header_branch
      %20 = sbr.rel (%p18) target = $region8
    $region5: #{tpu_custom_call.1} parent=1 // loop_body
      %s22 = ssub.s32 %s17, 1
      %s23 = ssub.s32 %s17, 2
      %s30 = sadd.s32 1, %s25
      %p31 = scmp.ge.s32.totalorder %s30, 1
      %s32 = scalar_select %p31, 0, %s30
      %s33 = sadd.s32 1, %s24
      %s34 = scalar_select %p31, %s33, %s24
      %p35 = scmp.ge.s32.totalorder %s34, 2
      %s36 = scalar_select %p35, 0, %s34
      %s37 = ssub.s32 %s25, %s32
      %p38 = scmp.eq.s32.totalorder %s37, 0
      %s40 = sadd.s32 %s39, 1
      %s41 = scalar_select %p38, %s39, %s40
      %p44 = pneg %p38
      %p45 = scmp.eq.s32.totalorder %s17, 1
      %p46 = por %p44, %p45
      %p47 = scmp.ne.s32.totalorder %s39, %s42
      %p48 = scmp.eq.s32.totalorder %s17, 0
      %p49 = por %p47, %p48
      %p50 = scmp.ne.s32.totalorder %s39, %s42
      %p51 = scmp.eq.s32.totalorder %s22, 1
      %p52 = por %p50, %p51
      %p53 = scmp.ne.s32.totalorder %s42, %s43
      %p54 = scmp.eq.s32.totalorder %s22, 0
      %p55 = por %p53, %p54
      %p56 = scmp.ne.s32.totalorder %s42, %s43
      %p57 = scmp.eq.s32.totalorder %s23, 1
      %p58 = por %p56, %p57
      %p60 = scmp.ne.s32.totalorder %s43, %s59
      %p61 = scmp.eq.s32.totalorder %s23, 0
      %p62 = por %p60, %p61
      %s63 = ssub.s32 %s24, %s36
      %s64 = ssub.s32 %s25, %s32
      %s65 = sor.u32 %s63, %s64
      %p66 = scmp.eq.s32.totalorder %s65, 0
      %s68 = sadd.s32 %s67, 1
      %s69 = scalar_select %p66, %s67, %s68
      %p72 = pneg %p66
      %p73 = scmp.eq.s32.totalorder %s17, 1
      %p74 = por %p72, %p73
      %p75 = scmp.ne.s32.totalorder %s67, %s70
      %p76 = scmp.eq.s32.totalorder %s17, 0
      %p77 = por %p75, %p76
      %p78 = scmp.ne.s32.totalorder %s67, %s70
      %p79 = scmp.eq.s32.totalorder %s22, 1
      %p80 = por %p78, %p79
      %p81 = scmp.ne.s32.totalorder %s70, %s71
      %p82 = scmp.eq.s32.totalorder %s22, 0
      %p83 = por %p81, %p82
      %p84 = scmp.ne.s32.totalorder %s70, %s71
      %p85 = scmp.eq.s32.totalorder %s23, 1
      %p86 = por %p84, %p85
      %p88 = scmp.ne.s32.totalorder %s71, %s87
      %p89 = scmp.eq.s32.totalorder %s23, 0
      %p90 = por %p88, %p89
      %p91 = scmp.le.s32.totalorder 1, %s17
      %p92 = scmp.lt.s32.totalorder %s17, 3
      %p93 = pnand %p91, %p92
      %p94 = pneg %p93
      // Predicated region
      $region9: #{tpu_custom_call.1} parent=5 // pred_check
        _
      $region10: #{tpu_custom_call.1} parent=5 // pred_check_branch
        %96 = sbr.rel (%p93) target = $region12
      $region11: #{tpu_custom_call.1} parent=5 // pred_region
        %s97 = ssub.s32 %s17, 1
        // Predicated region
        $region13: #{tpu_custom_call.1} parent=11 // pred_check
          %p98 = pneg %p55
        $region14: #{tpu_custom_call.1} parent=11 // pred_check_branch
          %100 = sbr.rel (%p98) target = $region16
        $region15: #{tpu_custom_call.1} parent=11 // pred_region
          %s102 = ssub.s32 128, 128
          %103 = vsyncadd [#allocation7], %s102
          %s104 = smul.addr %s27, 128
          %s105 = scalar_lea.hbm %s2, %s104
          %s107 = sshll.u32 [#allocation6], 4
          %s108 = int_to_ptr.vmem [resolvable:$true] %s107
          %110 = dma.hbm_to_vmem [thread:$0]  %s105, 128, %s108, [#allocation7]
        $region16: #{tpu_custom_call.1} parent=11 // pred_fallthru
          _
      $region12: #{tpu_custom_call.1} parent=5 // pred_fallthru
        _
      %p111 = scmp.lt.s32.totalorder %s17, 2
      // Predicated region
      $region17: #{tpu_custom_call.1} parent=5 // pred_check
        %p112 = pneg %p111
      $region18: #{tpu_custom_call.1} parent=5 // pred_check_branch
        %114 = sbr.rel (%p112) target = $region20
      $region19: #{tpu_custom_call.1} parent=5 // pred_region
        _
      $region20: #{tpu_custom_call.1} parent=5 // pred_fallthru
        _
      %p115 = scmp.le.s32.totalorder 1, %s17
      %p116 = scmp.lt.s32.totalorder %s17, 3
      %p117 = pnand %p115, %p116
      %p118 = pneg %p117
      // Predicated region
      $region21: #{tpu_custom_call.1} parent=5 // pred_check
        _
      $region22: #{tpu_custom_call.1} parent=5 // pred_check_branch
        %120 = sbr.rel (%p117) target = $region24
      $region23: #{tpu_custom_call.1} parent=5 // pred_region
        %s121 = ssub.s32 %s17, 1
        // Predicated region
        $region25: #{tpu_custom_call.1} parent=23 // pred_check
          %p122 = pneg %p55
        $region26: #{tpu_custom_call.1} parent=23 // pred_check_branch
          %124 = sbr.rel (%p122) target = $region28
        $region27: #{tpu_custom_call.1} parent=23 // pred_region
          %125 = dma.done [#allocation7], 128
        $region28: #{tpu_custom_call.1} parent=23 // pred_fallthru
          _
        %p126 = pneg %p55
        %p127 = pneg %p52
        %p128 = pneg %p83
        %p129 = pneg %p80
        %s130 = sand.u32 %s70, 1
        %s131 = scalar_lea.sflag [#allocation8], %s130
        %s132 = sand.u32 %s70, 1
        %s133 = smul.addr %s132, 8
        %s134 = scalar_lea.vmem [#allocation9], %s133
        %p135 = scmp.lt.s32.totalorder %s27, 0
        %s136 = ssub.s32 0, %s27
        %s137 = scalar_select %p135, %s136, %s27
        %s138 = sand.u32 %s137, 1
        %s139 = ssub.s32 0, %s138
        %s140 = scalar_select %p135, %s139, %s138
        %p141 = scmp.ne.s32.totalorder %s140, 0
        %p142 = scmp.lt.s32.totalorder %s140, 0
        %p143 = pnand %p142, %p141
        %p144 = pneg %p143
        %s145 = sadd.s32 %s140, 2
        %s146 = scalar_select %p144, %s145, %s140
        %p147 = scmp.eq.s32.totalorder %s27, 0
        // Predicated region
        $region29: #{tpu_custom_call.1} parent=23 // pred_check
          %p148 = pneg %p147
        $region30: #{tpu_custom_call.1} parent=23 // pred_check_branch
          %150 = sbr.rel (%p148) target = $region32
        $region31: #{tpu_custom_call.1} parent=23 // pred_region
          %s151 = smul.u32 %s26, 8
          loop: start=0, step=1, limit=8
          $region33: #{tpu_custom_call.1} parent=31 // loop_pre_header
            _
          $region34: #{tpu_custom_call.1} parent=31 // loop_header
            %s153 = sphi 0, %s157
            %p154 = scmp.ge.s32.totalorder %s153, 8
          $region35: #{tpu_custom_call.1} parent=31 // loop_header_branch
            %156 = sbr.rel (%p154) target = $region39
          $region36: #{tpu_custom_call.1} parent=31 // loop_body
            %s158 = sadd.s32 %s151, %s153
            %s159 = sld [smem:[#allocation5 + %s158]]
            %s160 = smul.addr %s159, 16
            %s161 = scalar_lea.hbm %s1, %s160
            %s162 = scalar_lea.vmem [#allocation2], %s153
            // Predicated region
            $region40: #{tpu_custom_call.1} parent=36 // pred_check
              _
            $region41: #{tpu_custom_call.1} parent=36 // pred_check_branch
              %164 = sbr.rel target = $region43
            $region42: #{tpu_custom_call.1} parent=36 // pred_region
              %165 = sst [smem:[#allocation12]] [#allocation11]
              %166 = sst [smem:[#allocation13]] [#allocation10]
            $region43: #{tpu_custom_call.1} parent=36 // pred_fallthru
              _
            %168 = shalt.err (0)
            %s170 = sshll.u32 %s162, 4
            %s171 = int_to_ptr.vmem [resolvable:$true] %s170
            %173 = dma.hbm_to_vmem [thread:$0]  %s161, 16, %s171, [#allocation3]
          $region37: #{tpu_custom_call.1} parent=31 // loop_footer
            %s157 = sadd.s32 1, %s153
          $region38: #{tpu_custom_call.1} parent=31 // loop_footer_branch
            %152 = sbr.rel target = $region34
          $region39: #{tpu_custom_call.1} parent=31 // loop_exit
            _
        $region32: #{tpu_custom_call.1} parent=23 // pred_fallthru
          _
        %s174 = sadd.s32 %s27, 1
        %p175 = scmp.lt.s32.totalorder %s174, 1
        // Predicated region
        $region44: #{tpu_custom_call.1} parent=23 // pred_check
          %p176 = pneg %p175
        $region45: #{tpu_custom_call.1} parent=23 // pred_check_branch
          %178 = sbr.rel (%p176) target = $region47
        $region46: #{tpu_custom_call.1} parent=23 // pred_region
          %s179 = ssub.s32 1, %s146
          %s180 = smul.u32 %s26, 8
          %s181 = smul.u32 %s174, 8
          %s182 = sadd.s32 %s180, %s181
          loop: start=0, step=1, limit=8
          $region48: #{tpu_custom_call.1} parent=46 // loop_pre_header
            _
          $region49: #{tpu_custom_call.1} parent=46 // loop_header
            %s184 = sphi 0, %s188
            %p185 = scmp.ge.s32.totalorder %s184, 8
          $region50: #{tpu_custom_call.1} parent=46 // loop_header_branch
            %187 = sbr.rel (%p185) target = $region54
          $region51: #{tpu_custom_call.1} parent=46 // loop_body
            %s189 = sadd.s32 %s182, %s184
            %s190 = sld [smem:[#allocation5 + %s189]]
            %s191 = smul.addr %s190, 16
            %s192 = scalar_lea.hbm %s1, %s191
            %s193 = smul.u32 %s179, 8
            %s194 = sadd.s32 %s184, %s193
            %s195 = scalar_lea.vmem [#allocation2], %s194
            %s196 = scalar_lea.sflag [#allocation3], %s179
            // Predicated region
            $region55: #{tpu_custom_call.1} parent=51 // pred_check
              _
            $region56: #{tpu_custom_call.1} parent=51 // pred_check_branch
              %198 = sbr.rel target = $region58
            $region57: #{tpu_custom_call.1} parent=51 // pred_region
              %199 = sst [smem:[#allocation12]] [#allocation15]
              %200 = sst [smem:[#allocation13]] [#allocation14]
            $region58: #{tpu_custom_call.1} parent=51 // pred_fallthru
              _
            %202 = shalt.err (0)
            %s204 = sshll.u32 %s195, 4
            %s205 = int_to_ptr.vmem [resolvable:$true] %s204
            %207 = dma.hbm_to_vmem [thread:$0]  %s192, 16, %s205, %s196
          $region52: #{tpu_custom_call.1} parent=46 // loop_footer
            %s188 = sadd.s32 1, %s184
          $region53: #{tpu_custom_call.1} parent=46 // loop_footer_branch
            %183 = sbr.rel target = $region49
          $region54: #{tpu_custom_call.1} parent=46 // loop_exit
            _
        $region47: #{tpu_custom_call.1} parent=23 // pred_fallthru
          _
        loop: start=0, step=1, limit=8
        $region59: #{tpu_custom_call.1} parent=23 // loop_pre_header
          _
        $region60: #{tpu_custom_call.1} parent=23 // loop_header
          %s209 = sphi 0, %s213
          %p210 = scmp.ge.s32.totalorder %s209, 8
        $region61: #{tpu_custom_call.1} parent=23 // loop_header_branch
          %212 = sbr.rel (%p210) target = $region65
        $region62: #{tpu_custom_call.1} parent=23 // loop_body
          %s214 = scalar_lea.sflag [#allocation3], %s146
          %216 = dma.done %s214, 16
        $region63: #{tpu_custom_call.1} parent=23 // loop_footer
          %s213 = sadd.s32 1, %s209
        $region64: #{tpu_custom_call.1} parent=23 // loop_footer_branch
          %208 = sbr.rel target = $region60
        $region65: #{tpu_custom_call.1} parent=23 // loop_exit
          _
        %s217 = smul.u32 %s146, 8
        %s218 = scalar_lea.vmem [#allocation2], %s217
        %v219 = vld [vmem:[%s218] sm:$0xff]
        %v220 = vld [vmem:[#allocation6] sm:$0xff]
        %v221 = vadd.f32 %v219, %v220
        %222 = vst [vmem:[%s134] sm:$0xff] %v221
        %s223 = sand.u32 %s70, 1
        %s224 = scalar_lea.sflag [#allocation8], %s223
        %s225 = sand.u32 %s70, 1
        %s226 = smul.addr %s225, 8
        %s227 = scalar_lea.vmem [#allocation9], %s226
        // Predicated region
        $region66: #{tpu_custom_call.1} parent=23 // pred_check
          %p228 = pneg %p80
        $region67: #{tpu_custom_call.1} parent=23 // pred_check_branch
          %230 = sbr.rel (%p228) target = $region69
        $region68: #{tpu_custom_call.1} parent=23 // pred_region
          %s232 = ssub.s32 128, 128
          %233 = vsyncadd %s224, %s232
          %s234 = sadd.s32 %s27, %s26
          %s235 = smul.addr %s234, 128
          %s236 = scalar_lea.hbm %s3, %s235
          %s238 = sshll.u32 %s227, 4
          %s239 = int_to_ptr.vmem [resolvable:$true] %s238
          %241 = dma.vmem_to_hbm [thread:$0]  %s239, 128, %s236, %s224
        $region69: #{tpu_custom_call.1} parent=23 // pred_fallthru
          _
      $region24: #{tpu_custom_call.1} parent=5 // pred_fallthru
        _
      %p242 = scmp.le.s32.totalorder 2, %s17
      // Predicated region
      $region70: #{tpu_custom_call.1} parent=5 // pred_check
        %p243 = pneg %p242
      $region71: #{tpu_custom_call.1} parent=5 // pred_check_branch
        %245 = sbr.rel (%p243) target = $region73
      $region72: #{tpu_custom_call.1} parent=5 // pred_region
        %s246 = ssub.s32 %s17, 2
        // Predicated region
        $region74: #{tpu_custom_call.1} parent=72 // pred_check
          %p247 = pneg %p86
        $region75: #{tpu_custom_call.1} parent=72 // pred_check_branch
          %249 = sbr.rel (%p247) target = $region77
        $region76: #{tpu_custom_call.1} parent=72 // pred_region
          %s250 = sand.u32 %s71, 1
          %s251 = scalar_lea.sflag [#allocation8], %s250
          %s252 = sand.u32 %s71, 1
          %s253 = smul.addr %s252, 8
          %s254 = scalar_lea.vmem [#allocation9], %s253
          %255 = dma.done %s251, 128
        $region77: #{tpu_custom_call.1} parent=72 // pred_fallthru
          _
      $region73: #{tpu_custom_call.1} parent=5 // pred_fallthru
        _
    $region6: #{tpu_custom_call.1} parent=1 // loop_footer
      %s21 = sadd.s32 1, %s17
    $region7: #{tpu_custom_call.1} parent=1 // loop_footer_branch
      %16 = sbr.rel target = $region3
    $region8: #{tpu_custom_call.1} parent=1 // loop_exit
      _
    %256 = vsyncpa [#allocation7], 1
    %s257 = scalar_lea.sflag [#allocation7], 1
    %258 = vsyncpa %s257, 1
    %259 = vsyncpa [#allocation8], 1
    %s260 = scalar_lea.sflag [#allocation8], 1
    %261 = vsyncpa %s260, 1
  %262 = vsyncmov [#allocation3]
  %s263 = vpop.sfrf %262
  %p264 = scmp.eq.s32.totalorder %s263, 0
  %p265 = pneg %p264
  %267 = shalt.err (%p265)
  %s268 = scalar_lea.sflag [#allocation3], 1
  %269 = vsyncmov %s268
  %s270 = vpop.sfrf %269
  %p271 = scmp.eq.s32.totalorder %s270, 0
  %p272 = pneg %p271
  %274 = shalt.err (%p272)

</llo_original>
